<compile_context>
chip_gen: v5e
topology: v5e:2x2
jax: 0.10.0
libtpu: 0.0.40
codegen_flags: <defaults>
</compile_context>

<pallas_src>
import functools

import jax
import jax.numpy as jnp
from jax.experimental import pallas as pl
from jax.experimental.pallas import tpu as pltpu

HID_SIZE = 128


def _a2c_kernel(x_ref, w1_ref, b1_ref, wh_ref, bh_ref, out_ref, *, act_size):
    # base: Linear + ReLU (MXU matmul, f32 accumulation)
    x = x_ref[...]
    h = jnp.dot(x, w1_ref[...], preferred_element_type=jnp.float32) + b1_ref[...]
    h = jnp.maximum(h, 0.0)

    # fused heads: single lane-dense matmul, columns = [mu | var | value | pad]
    pre = jnp.dot(h, wh_ref[...], preferred_element_type=jnp.float32) + bh_ref[...]

    # per-column activation selection via lane-index masks (stays lane-dense)
    col = jax.lax.broadcasted_iota(jnp.int32, pre.shape, dimension=1)
    tanh_v = jnp.tanh(pre)
    # numerically-stable single-branch softplus: 1 exp + 1 log1p per element
    sp_v = jnp.maximum(pre, 0.0) + jnp.log1p(jnp.exp(-jnp.abs(pre)))
    out = jnp.where(col < act_size, tanh_v,
                    jnp.where(col < 2 * act_size, sp_v, pre))
    out_ref[...] = out


def a2c_forward(x, params, *, tile_b=512):
    """Returns (mu, var, value) like A2CModel.forward."""
    (w1, b1, wmu, bmu, wvar, bvar, wv, bv) = params
    B, obs = x.shape
    hid = w1.shape[1]
    act = wmu.shape[1]

    # --- fuse head weights/biases into one lane-dense [hid, N_pad] / [1, N_pad] slab ---
    n_heads = 2 * act + 1
    n_pad = max(128, pl.cdiv(n_heads, 128) * 128)
    wh = jnp.zeros((hid, n_pad), jnp.float32)
    wh = wh.at[:, :act].set(wmu)
    wh = wh.at[:, act:2 * act].set(wvar)
    wh = wh.at[:, 2 * act:2 * act + 1].set(wv)
    bh = jnp.zeros((1, n_pad), jnp.float32)
    bh = bh.at[:, :act].set(bmu.reshape(1, act))
    bh = bh.at[:, act:2 * act].set(bvar.reshape(1, act))
    bh = bh.at[:, 2 * act:2 * act + 1].set(bv.reshape(1, 1))

    # --- batch tiling (multiple of 8 sublanes); pad B up to a tile multiple ---
    tb = min(tile_b, max(8, ((B + 7) // 8) * 8))
    b_pad = pl.cdiv(B, tb) * tb
    x_p = x if b_pad == B else jnp.pad(x, ((0, b_pad - B), (0, 0)))

    kernel = functools.partial(_a2c_kernel, act_size=act)

    out = pl.pallas_call(
        kernel,
        out_shape=jax.ShapeDtypeStruct((b_pad, n_pad), jnp.float32),
        grid_spec=pltpu.PrefetchScalarGridSpec(
            num_scalar_prefetch=0,
            grid=(b_pad // tb,),
            in_specs=[
                pl.BlockSpec((tb, obs), lambda i: (i, 0)),      # x tile
                pl.BlockSpec((obs, hid), lambda i: (0, 0)),     # W1 (resident)
                pl.BlockSpec((1, hid), lambda i: (0, 0)),       # b1 (resident)
                pl.BlockSpec((hid, n_pad), lambda i: (0, 0)),   # fused head W (resident)
                pl.BlockSpec((1, n_pad), lambda i: (0, 0)),     # fused head b (resident)
            ],
            out_specs=pl.BlockSpec((tb, n_pad), lambda i: (i, 0)),
        ),
        compiler_params=pltpu.CompilerParams(
            dimension_semantics=("parallel",),
        ),
    )(x_p, w1, b1, wh, bh)

    mu = out[:B, :act]
    var = out[:B, act:2 * act]
    val = out[:B, 2 * act:2 * act + 1]
    return mu, var, val


def init_params(key, obs_size, act_size):
    """Deterministic synthetic parameters (shapes follow nn.Linear in the module)."""
    ks = jax.random.split(key, 8)

    def lin(kw, kb, fan_in, fan_out):
        bound = 1.0 / jnp.sqrt(fan_in)
        w = jax.random.uniform(kw, (fan_in, fan_out), jnp.float32, -bound, bound)
        b = jax.random.uniform(kb, (1, fan_out), jnp.float32, -bound, bound)
        return w, b

    w1, b1 = lin(ks[0], ks[1], obs_size, HID_SIZE)
    wmu, bmu = lin(ks[2], ks[3], HID_SIZE, act_size)
    wvar, bvar = lin(ks[4], ks[5], HID_SIZE, act_size)
    wv, bv = lin(ks[6], ks[7], HID_SIZE, 1)
    return (w1, b1, wmu, bmu, wvar, bvar, wv, bv)


def a2c_reference(x, params):
    (w1, b1, wmu, bmu, wvar, bvar, wv, bv) = params
    h = jnp.maximum(x @ w1 + b1, 0.0)
    mu = jnp.tanh(h @ wmu + bmu)
    var = jax.nn.softplus(h @ wvar + bvar)
    val = h @ wv + bv
    return mu, var, val


if __name__ == "__main__":
    B, OBS, ACT = 2, 16, 8
    key = jax.random.PRNGKey(0)
    kx, kp = jax.random.split(key)
    x = jax.random.normal(kx, (B, OBS), jnp.float32)
    params = init_params(kp, OBS, ACT)

    mu, var, val = a2c_forward(x, params)
    jax.block_until_ready((mu, var, val))

    mu_ref, var_ref, val_ref = a2c_reference(x, params)
    assert mu.shape == (B, ACT) and var.shape == (B, ACT) and val.shape == (B, 1)
    assert jnp.allclose(mu, mu_ref, atol=1e-5, rtol=1e-5)
    assert jnp.allclose(var, var_ref, atol=1e-5, rtol=1e-5)
    assert jnp.allclose(val, val_ref, atol=1e-5, rtol=1e-5)

    # second call with a batch that is not a multiple of the tile (exercises padding path)
    x2 = jax.random.normal(jax.random.PRNGKey(1), (13, OBS), jnp.float32)
    mu2, var2, val2 = a2c_forward(x2, params)
    jax.block_until_ready((mu2, var2, val2))
    mu2r, var2r, val2r = a2c_reference(x2, params)
    assert jnp.allclose(mu2, mu2r, atol=1e-5, rtol=1e-5)
    assert jnp.allclose(var2, var2r, atol=1e-5, rtol=1e-5)
    assert jnp.allclose(val2, val2r, atol=1e-5, rtol=1e-5)

    print("KERNEL_OK")
</pallas_src>

<mosaic_0001>
module attributes {stable_mosaic.version = 11 : i64} {
  func.func @_a2c_kernel(%arg0: i32, %arg1: memref<8x16xf32, #tpu.memory_space<vmem>>, %arg2: memref<16x128xf32, #tpu.memory_space<vmem>>, %arg3: memref<1x128xf32, #tpu.memory_space<vmem>>, %arg4: memref<128x128xf32, #tpu.memory_space<vmem>>, %arg5: memref<1x128xf32, #tpu.memory_space<vmem>>, %arg6: memref<8x128xf32, #tpu.memory_space<vmem>>) attributes {dimension_semantics = [#tpu.dimension_semantics<parallel>], iteration_bounds = array<i64: 1>, scalar_prefetch = 0 : i64, scratch_operands = 0 : i64, tpu.core_type = #tpu.core_type<tc>, window_params = [{transform_indices = @transform_0, window_bounds = array<i64: 8, 16>}, {pipeline_mode = #tpu.pipeline_mode<synchronous>, transform_indices = @transform_1, window_bounds = array<i64: 16, 128>}, {pipeline_mode = #tpu.pipeline_mode<synchronous>, transform_indices = @transform_2, window_bounds = array<i64: 1, 128>}, {pipeline_mode = #tpu.pipeline_mode<synchronous>, transform_indices = @transform_3, window_bounds = array<i64: 128, 128>}, {pipeline_mode = #tpu.pipeline_mode<synchronous>, transform_indices = @transform_4, window_bounds = array<i64: 1, 128>}, {transform_indices = @transform_5, window_bounds = array<i64: 8, 128>}]} {
    %c0 = arith.constant 0 : index
    %c0_0 = arith.constant 0 : index
    %0 = vector.load %arg1[%c0, %c0_0] : memref<8x16xf32, #tpu.memory_space<vmem>>, vector<8x16xf32>
    %c0_1 = arith.constant 0 : index
    %c0_2 = arith.constant 0 : index
    %1 = vector.load %arg2[%c0_1, %c0_2] : memref<16x128xf32, #tpu.memory_space<vmem>>, vector<16x128xf32>
    %cst = arith.constant dense<0.000000e+00> : vector<8x128xf32>
    %2 = tpu.matmul %0, %1, %cst {dimension_numbers = #tpu.dot_dimension_numbers<[1], [0], [0], [1], [0, 0, 1, 1], [], []>} : vector<8x16xf32>, vector<16x128xf32>, vector<8x128xf32> -> vector<8x128xf32>
    %c0_3 = arith.constant 0 : index
    %c0_4 = arith.constant 0 : index
    %3 = vector.load %arg3[%c0_3, %c0_4] : memref<1x128xf32, #tpu.memory_space<vmem>>, vector<1x128xf32>
    %4 = vector.broadcast %3 : vector<1x128xf32> to vector<8x128xf32>
    %5 = arith.addf %2, %4 : vector<8x128xf32>
    %cst_5 = arith.constant 0.000000e+00 : f32
    %6 = vector.broadcast %cst_5 : f32 to vector<8x128xf32>
    %7 = arith.maximumf %5, %6 : vector<8x128xf32>
    %c0_6 = arith.constant 0 : index
    %c0_7 = arith.constant 0 : index
    %8 = vector.load %arg4[%c0_6, %c0_7] : memref<128x128xf32, #tpu.memory_space<vmem>>, vector<128x128xf32>
    %cst_8 = arith.constant dense<0.000000e+00> : vector<8x128xf32>
    %9 = tpu.matmul %7, %8, %cst_8 {dimension_numbers = #tpu.dot_dimension_numbers<[1], [0], [0], [1], [0, 0, 1, 1], [], []>} : vector<8x128xf32>, vector<128x128xf32>, vector<8x128xf32> -> vector<8x128xf32>
    %c0_9 = arith.constant 0 : index
    %c0_10 = arith.constant 0 : index
    %10 = vector.load %arg5[%c0_9, %c0_10] : memref<1x128xf32, #tpu.memory_space<vmem>>, vector<1x128xf32>
    %11 = vector.broadcast %10 : vector<1x128xf32> to vector<8x128xf32>
    %12 = arith.addf %9, %11 : vector<8x128xf32>
    %13 = tpu.iota {dimensions = array<i32: 1>} : vector<8x128xi32>
    %14 = math.tanh %12 : vector<8x128xf32>
    %cst_11 = arith.constant 0.000000e+00 : f32
    %15 = vector.broadcast %cst_11 : f32 to vector<8x128xf32>
    %16 = arith.maximumf %12, %15 : vector<8x128xf32>
    %17 = math.absf %12 : vector<8x128xf32>
    %cst_12 = arith.constant 0.000000e+00 : f32
    %18 = vector.broadcast %cst_12 : f32 to vector<8x128xf32>
    %19 = arith.subf %18, %17 : vector<8x128xf32>
    %20 = math.exp %19 : vector<8x128xf32>
    %21 = math.log1p %20 : vector<8x128xf32>
    %22 = arith.addf %16, %21 : vector<8x128xf32>
    %c8_i32 = arith.constant 8 : i32
    %23 = vector.broadcast %c8_i32 : i32 to vector<8x128xi32>
    %24 = arith.cmpi slt, %13, %23 : vector<8x128xi32>
    %c16_i32 = arith.constant 16 : i32
    %25 = vector.broadcast %c16_i32 : i32 to vector<8x128xi32>
    %26 = arith.cmpi slt, %13, %25 : vector<8x128xi32>
    %27 = arith.select %26, %22, %12 : vector<8x128xi1>, vector<8x128xf32>
    %28 = arith.select %24, %14, %27 : vector<8x128xi1>, vector<8x128xf32>
    %c0_13 = arith.constant 0 : index
    %c0_14 = arith.constant 0 : index
    %29 = vector.load %arg6[%c0_13, %c0_14] : memref<8x128xf32, #tpu.memory_space<vmem>>, vector<8x128xf32>
    tpu.vector_store %arg6[%c0_13, %c0_14], %28 {strides = array<i32>} : memref<8x128xf32, #tpu.memory_space<vmem>>, vector<8x128xf32>,
    return
  }
  func.func @transform_0(%arg0: i32) -> (i32, i32) {
    %c0_i32 = arith.constant 0 : i32
    %c0_i32_0 = arith.constant 0 : i32
    return %arg0, %c0_i32 : i32, i32
  }
  func.func @transform_1(%arg0: i32) -> (i32, i32) {
    %c0_i32 = arith.constant 0 : i32
    %c0_i32_0 = arith.constant 0 : i32
    %c0_i32_1 = arith.constant 0 : i32
    return %c0_i32, %c0_i32_0 : i32, i32
  }
  func.func @transform_2(%arg0: i32) -> (i32, i32) {
    %c0_i32 = arith.constant 0 : i32
    %c0_i32_0 = arith.constant 0 : i32
    %c0_i32_1 = arith.constant 0 : i32
    return %c0_i32, %c0_i32_0 : i32, i32
  }
  func.func @transform_3(%arg0: i32) -> (i32, i32) {
    %c0_i32 = arith.constant 0 : i32
    %c0_i32_0 = arith.constant 0 : i32
    %c0_i32_1 = arith.constant 0 : i32
    return %c0_i32, %c0_i32_0 : i32, i32
  }
  func.func @transform_4(%arg0: i32) -> (i32, i32) {
    %c0_i32 = arith.constant 0 : i32
    %c0_i32_0 = arith.constant 0 : i32
    %c0_i32_1 = arith.constant 0 : i32
    return %c0_i32, %c0_i32_0 : i32, i32
  }
  func.func @transform_5(%arg0: i32) -> (i32, i32) {
    %c0_i32 = arith.constant 0 : i32
    %c0_i32_0 = arith.constant 0 : i32
    return %arg0, %c0_i32 : i32, i32
  }
}

</mosaic_0001>

<llo_original>
// kernel: tpu_custom_call.1
$region0: #{tpu_custom_call.1}
  #allocation0 [shape = 'u32[]', space=smem, size = 0x4, offset = 0x4, fixed_abs, tag = 'smem constant byte address 0x4 - core index']
  #allocation1 [shape = 'u32[72,128]{1,0:T(1,128)}', space=vmem, size = 0x9000, scoped, tag = 'internal scratch']
  %s0 = inlined_call_operand.hbm [shape: f32[8,16], index: 0, kind: input, shape index: {}]
  %s1 = inlined_call_operand.hbm [shape: f32[16,128], index: 1, kind: input, shape index: {}]
  %s2 = inlined_call_operand.vmem [shape: f32[1,128], index: 2, kind: input, shape index: {}]
  %s3 = inlined_call_operand.hbm [shape: f32[128,128], index: 3, kind: input, shape index: {}]
  %s4 = inlined_call_operand.vmem [shape: f32[1,128], index: 4, kind: input, shape index: {}]
  %s5 = inlined_call_operand.hbm [shape: f32[8,128], index: 5, kind: output, shape index: {}]
  %s6 = sld [smem:[#allocation0]]
  $region42: #{tpu_custom_call.1} parent=0
    _
  %s8 = ssub.s32 1, %s6
  %s9 = scalar_select 0, %s8, %s6
  $region1: #{tpu_custom_call.1} parent=0
    #allocation2 [shape = 'u8[4096]{0}', space=vmem, size = 0x1000, scoped, tag = 'input window, operand 0, single buffered']
    #allocation3 [shape = 's32[1]{0}', space=sflag, size = 0x4, scoped, tag = 'scoped memory for tpu_custom_call.1']
    #allocation4 [shape = 's32[1]{0}', space=sflag, size = 0x4, scoped, tag = 'scoped memory for tpu_custom_call.1']
    #allocation5 [shape = 'u8[8192]{0}', space=vmem, size = 0x2000, scoped, tag = 'input window, operand 1, single buffered']
    #allocation6 [shape = 's32[1]{0}', space=sflag, size = 0x4, scoped, tag = 'scoped memory for tpu_custom_call.1']
    #allocation7 [shape = 'u8[65536]{0}', space=vmem, size = 0x10000, scoped, tag = 'input window, operand 3, single buffered']
    #allocation8 [shape = 'u8[4096]{0}', space=vmem, size = 0x1000, scoped, tag = 'output window, operand 0, single buffered']
    %10 = vsyncpa [#allocation3], 0
    %11 = vsyncpa [#allocation6], 0
    %12 = vsyncpa [#allocation4], 0
    // Predicated region
    $region2: #{tpu_custom_call.1} parent=1 // pred_check
      _
    $region3: #{tpu_custom_call.1} parent=1 // pred_check_branch
      %14 = sbr.rel (0) target = $region5
    $region4: #{tpu_custom_call.1} parent=1 // pred_region
      %16 = vsyncadd [#allocation3], 0
      %s18 = sshll.u32 %s0, 4
      %s19 = int_to_ptr.hbm [resolvable:$true] %s18
      %s20 = sshll.u32 [#allocation2], 4
      %s21 = int_to_ptr.vmem [resolvable:$true] %s20
      %23 = dma.hbm_to_vmem [thread:$0]  %s19, 128, %s21, [#allocation3]
    $region5: #{tpu_custom_call.1} parent=1 // pred_fallthru
      _
    // Predicated region
    $region6: #{tpu_custom_call.1} parent=1 // pred_check
      _
    $region7: #{tpu_custom_call.1} parent=1 // pred_check_branch
      %25 = sbr.rel (0) target = $region9
    $region8: #{tpu_custom_call.1} parent=1 // pred_region
      %27 = vsyncadd [#allocation6], 0
      %s28 = sshll.u32 %s1, 4
      %s29 = int_to_ptr.hbm [resolvable:$true] %s28
      %s30 = sshll.u32 [#allocation5], 4
      %s31 = int_to_ptr.vmem [resolvable:$true] %s30
      %36 = dma.hbm_to_vmem [thread:$0]  %s29, 256, %s31, [#allocation6], 128, 128, 8
    $region9: #{tpu_custom_call.1} parent=1 // pred_fallthru
      _
    // Predicated region
    $region10: #{tpu_custom_call.1} parent=1 // pred_check
      _
    $region11: #{tpu_custom_call.1} parent=1 // pred_check_branch
      %38 = sbr.rel (0) target = $region13
    $region12: #{tpu_custom_call.1} parent=1 // pred_region
      _
    $region13: #{tpu_custom_call.1} parent=1 // pred_fallthru
      _
    // Predicated region
    $region14: #{tpu_custom_call.1} parent=1 // pred_check
      _
    $region15: #{tpu_custom_call.1} parent=1 // pred_check_branch
      %40 = sbr.rel (0) target = $region17
    $region16: #{tpu_custom_call.1} parent=1 // pred_region
      %42 = vsyncadd [#allocation6], 0
      %s43 = sshll.u32 %s3, 4
      %s44 = int_to_ptr.hbm [resolvable:$true] %s43
      %s45 = sshll.u32 [#allocation7], 4
      %s46 = int_to_ptr.vmem [resolvable:$true] %s45
      %51 = dma.hbm_to_vmem [thread:$0]  %s44, 2048, %s46, [#allocation6], 128, 128, 8
    $region17: #{tpu_custom_call.1} parent=1 // pred_fallthru
      _
    // Predicated region
    $region18: #{tpu_custom_call.1} parent=1 // pred_check
      _
    $region19: #{tpu_custom_call.1} parent=1 // pred_check_branch
      %53 = sbr.rel (0) target = $region21
    $region20: #{tpu_custom_call.1} parent=1 // pred_region
      _
    $region21: #{tpu_custom_call.1} parent=1 // pred_fallthru
      _
    // Predicated region
    $region22: #{tpu_custom_call.1} parent=1 // pred_check
      _
    $region23: #{tpu_custom_call.1} parent=1 // pred_check_branch
      %55 = sbr.rel (0) target = $region25
    $region24: #{tpu_custom_call.1} parent=1 // pred_region
      %57 = dma.done [#allocation3], 128
    $region25: #{tpu_custom_call.1} parent=1 // pred_fallthru
      _
    // Predicated region
    $region26: #{tpu_custom_call.1} parent=1 // pred_check
      _
    $region27: #{tpu_custom_call.1} parent=1 // pred_check_branch
      %59 = sbr.rel (0) target = $region29
    $region28: #{tpu_custom_call.1} parent=1 // pred_region
      %61 = dma.done [#allocation6], 256
    $region29: #{tpu_custom_call.1} parent=1 // pred_fallthru
      _
    // Predicated region
    $region30: #{tpu_custom_call.1} parent=1 // pred_check
      _
    $region31: #{tpu_custom_call.1} parent=1 // pred_check_branch
      %63 = sbr.rel (0) target = $region33
    $region32: #{tpu_custom_call.1} parent=1 // pred_region
      %65 = dma.done [#allocation6], 2048
    $region33: #{tpu_custom_call.1} parent=1 // pred_fallthru
      _
    %v66 = vld [vmem:[#allocation2] sm:$0xff]
    %v67 = vld [vmem:[#allocation5] sm:$0xff]
    %v68 = vld [vmem:[#allocation5 + $0x8] sm:$0xff]
    %v69 = vld [vmem:[%s2] sm:$0x1]
    %v71 = vperm.slane %v69, 0
    %vm73 = vcmask 130048
    %v75 = vsel %vm73, %v66, 0
    %77 = vmatpush.msra.mxu0 0.0
    %78 = vmatpush.msra.mxu0 0.0
    %79 = vmatpush.msra.mxu0 0.0
    %80 = vmatpush.msra.mxu0 0.0
    %81 = vmatpush.msra.mxu0 0.0
    %82 = vmatpush.msra.mxu0 0.0
    %83 = vmatpush.msra.mxu0 0.0
    %84 = vmatpush.msra.mxu0 0.0
    %85 = vmatpush.msra.mxu0 0.0
    %86 = vmatpush.msra.mxu0 0.0
    %87 = vmatpush.msra.mxu0 0.0
    %88 = vmatpush.msra.mxu0 0.0
    %89 = vmatpush.msra.mxu0 0.0
    %90 = vmatpush.msra.mxu0 0.0
    %91 = vmatpush.msra.mxu0 %v68
    %92 = vmatpush.msra.mxu0 %v67
    %93 = vmatmul.f32.gmra.mxu0 %v75
    %v94 = vpop.f32.mrf.mxu0
    %v95 = vadd.f32 %v71, %v94
    %96 = vdwg.mxu0
    %v97 = vmax.f32 %v95, 0.0
    %v98 = vld [vmem:[#allocation7] sm:$0xff]
    %v99 = vld [vmem:[#allocation7 + $0x8] sm:$0xff]
    %v100 = vld [vmem:[#allocation7 + $0x10] sm:$0xff]
    %v101 = vld [vmem:[#allocation7 + $0x18] sm:$0xff]
    %v102 = vld [vmem:[#allocation7 + $0x20] sm:$0xff]
    %v103 = vld [vmem:[#allocation7 + $0x28] sm:$0xff]
    %v104 = vld [vmem:[#allocation7 + $0x30] sm:$0xff]
    %v105 = vld [vmem:[#allocation7 + $0x38] sm:$0xff]
    %v106 = vld [vmem:[#allocation7 + $0x40] sm:$0xff]
    %v107 = vld [vmem:[#allocation7 + $0x48] sm:$0xff]
    %v108 = vld [vmem:[#allocation7 + $0x50] sm:$0xff]
    %v109 = vld [vmem:[#allocation7 + $0x58] sm:$0xff]
    %v110 = vld [vmem:[#allocation7 + $0x60] sm:$0xff]
    %v111 = vld [vmem:[#allocation7 + $0x68] sm:$0xff]
    %v112 = vld [vmem:[#allocation7 + $0x70] sm:$0xff]
    %v113 = vld [vmem:[#allocation7 + $0x78] sm:$0xff]
    %v114 = vld [vmem:[%s4] sm:$0x1]
    %v116 = vperm.slane %v114, 0
    %118 = vmatpush.msra.mxu0 %v113
    %119 = vmatpush.msra.mxu0 %v112
    %120 = vmatpush.msra.mxu0 %v111
    %121 = vmatpush.msra.mxu0 %v110
    %122 = vmatpush.msra.mxu0 %v109
    %123 = vmatpush.msra.mxu0 %v108
    %124 = vmatpush.msra.mxu0 %v107
    %125 = vmatpush.msra.mxu0 %v106
    %126 = vmatpush.msra.mxu0 %v105
    %127 = vmatpush.msra.mxu0 %v104
    %128 = vmatpush.msra.mxu0 %v103
    %129 = vmatpush.msra.mxu0 %v102
    %130 = vmatpush.msra.mxu0 %v101
    %131 = vmatpush.msra.mxu0 %v100
    %132 = vmatpush.msra.mxu0 %v99
    %133 = vmatpush.msra.mxu0 %v98
    %134 = vmatmul.f32.gmra.mxu0 %v97
    %v135 = vpop.f32.mrf.mxu0
    %v136 = vadd.f32 %v116, %v135
    %137 = vdwg.mxu0
    %v138 = vlaneseq
    %v139 = vand.u32 %v138, 127
    %v140 = vtanh.pop %v136
    %v141 = vmax.f32 %v136, 0.0
    %v142 = vand.u32 2147483647, %v136
    %v143 = vsub.f32 0.0, %v142
    %v144 = vmul.f32 %v143, 1.442695
    %v145 = vpow.pop %v144
    %v146 = vadd.f32 %v145, 1.0
    %v147 = vlog2.pop %v146
    %v148 = vmul.f32 %v147, 0.6931472
    %v149 = vmul.f32 -0.5, %v145
    %v150 = vadd.f32 %v149, 1.0
    %v151 = vmul.f32 %v150, %v145
    %v152 = vand.u32 2147483647, %v145
    %vm153 = vcmp.lt.f32.partialorder %v152, 0.0004427343
    %v154 = vsel %vm153, %v151, %v148
    %v155 = vadd.f32 %v141, %v154
    %vm156 = vcmp.lt.s32.totalorder %v139, 8
    %vm157 = vcmp.lt.s32.totalorder %v139, 16
    %v158 = vsel %vm157, %v155, %v136
    %v159 = vsel %vm156, %v140, %v158
    %160 = vst [vmem:[#allocation8] sm:$0xff] %v159
    // Predicated region
    $region34: #{tpu_custom_call.1} parent=1 // pred_check
      _
    $region35: #{tpu_custom_call.1} parent=1 // pred_check_branch
      %162 = sbr.rel (0) target = $region37
    $region36: #{tpu_custom_call.1} parent=1 // pred_region
      %164 = vsyncadd [#allocation4], 0
      %s166 = sshll.u32 [#allocation8], 4
      %s167 = int_to_ptr.vmem [resolvable:$true] %s166
      %s168 = sshll.u32 %s5, 4
      %s169 = int_to_ptr.hbm [resolvable:$true] %s168
      %171 = dma.vmem_to_hbm [thread:$0]  %s167, 128, %s169, [#allocation4]
    $region37: #{tpu_custom_call.1} parent=1 // pred_fallthru
      _
    // Predicated region
    $region38: #{tpu_custom_call.1} parent=1 // pred_check
      _
    $region39: #{tpu_custom_call.1} parent=1 // pred_check_branch
      %173 = sbr.rel (0) target = $region41
    $region40: #{tpu_custom_call.1} parent=1 // pred_region
      %175 = dma.done [#allocation4], 128
    $region41: #{tpu_custom_call.1} parent=1 // pred_fallthru
      _
    %176 = vsyncpa [#allocation3], 1
    %177 = vsyncpa [#allocation6], 1
    %178 = vsyncpa [#allocation4], 1

</llo_original>
